<compile_context>
chip_gen: v7x
topology: tpu7x:2x2x1
jax: 0.10.0
libtpu: 0.0.40
codegen_flags: <defaults>
</compile_context>

<pallas_src>
import functools

import jax
import jax.numpy as jnp
from jax import lax
from jax.experimental import pallas as pl
from jax.experimental.pallas import tpu as pltpu

MARGIN = 1.0
EPS = 1e-6             # pairwise_distance eps (added elementwise to the diff)
NORMALIZE_EPS = 1e-12  # F.normalize default eps (clamp_min on the norm)


def _contrastive_loss_kernel(x1_ref, x2_ref, lab_ref, loss_ref, *,
                             margin, eps, norm_eps):
    # Blocks are (TB, D): batch on sublanes, features on lanes.
    x1 = x1_ref[...].astype(jnp.float32)            # (TB, D)
    x2 = x2_ref[...].astype(jnp.float32)            # (TB, D)
    lab = lab_ref[...].astype(jnp.float32)          # (TB, 1)

    # Per-sample L2 normalization.  rsqrt(max(sumsq, eps^2)) is exactly
    # x / clamp_min(||x||_2, eps) and runs on the EUP instead of VALU divides.
    ss1 = jnp.sum(x1 * x1, axis=-1, keepdims=True)            # (TB, 1)
    ss2 = jnp.sum(x2 * x2, axis=-1, keepdims=True)            # (TB, 1)
    inv1 = lax.rsqrt(jnp.maximum(ss1, norm_eps * norm_eps))
    inv2 = lax.rsqrt(jnp.maximum(ss2, norm_eps * norm_eps))

    # pairwise_distance: ||x1n - x2n + eps||_2 along the feature dim.
    diff = x1 * inv1 - x2 * inv2 + eps                         # (TB, D)
    d2 = jnp.sum(diff * diff, axis=-1, keepdims=True)          # (TB, 1)
    d = jnp.sqrt(d2)

    hinge = jnp.maximum(margin - d, 0.0)
    # Rows beyond the true batch only exist in the (possibly ragged) last
    # block; they are never written back because out_shape is exactly (B, 1),
    # and no op here mixes rows, so no explicit masking is needed.
    loss_ref[...] = lab * d2 + (1.0 - lab) * hinge * hinge     # (TB, 1)


def _round_up(x, m):
    return (x + m - 1) // m * m


def _vmem_budget():
    """Generation-aware (working-set budget, scoped VMEM limit) in bytes."""
    try:
        cap = int(pltpu.get_tpu_info().vmem_capacity_bytes)
    except Exception:
        cap = 64 << 20  # conservative: v7x has 64 MiB per TensorCore
    budget = min(cap // 3, 32 << 20)   # double-buffered working set target
    limit = min(cap // 2, 64 << 20)    # what we ask the compiler for
    return budget, limit


def _choose_tile(b, d, vmem_budget_bytes):
    """Batch-tile (sublane) size.  Multiple of 8; accounts for lane padding."""
    d_pad = max(_round_up(d, 128), 128)
    # Per batch-row VMEM, double-buffered: 2 inputs (lane-padded to d_pad) plus
    # the label and output blocks (each (TB, 1), lane-padded to 128), all f32.
    bytes_per_row = 2 * (2 * d_pad + 2 * 128) * 4
    tb_budget = max(8, (vmem_budget_bytes // bytes_per_row) // 8 * 8)
    # >= 2 tiles when the batch allows it (feeds both v7x TensorCores; the one
    # extra grid step is negligible on single-TC v5e/v6e), and never bigger
    # than needed for tiny batches.
    tb_target = max(8, _round_up(pl.cdiv(b, 2), 8))
    return int(min(tb_budget, tb_target))


def contrastive_loss(x1, x2, label, margin=MARGIN, eps=EPS):
    """x1, x2: (B, D) float; label: (B,) 0/1. Returns scalar mean loss."""
    B, D = x1.shape
    itemsize = jnp.dtype(x1.dtype).itemsize
    vmem_budget, vmem_limit = _vmem_budget()
    TB = _choose_tile(B, D, vmem_budget)
    num_tiles = pl.cdiv(B, TB)

    lab2d = label.astype(jnp.float32).reshape(B, 1)

    kernel = functools.partial(
        _contrastive_loss_kernel,
        margin=float(margin), eps=float(eps), norm_eps=NORMALIZE_EPS)

    per_sample = pl.pallas_call(
        kernel,
        out_shape=jax.ShapeDtypeStruct((B, 1), jnp.float32),
        grid_spec=pltpu.PrefetchScalarGridSpec(
            num_scalar_prefetch=0,
            grid=(num_tiles,),
            in_specs=[
                pl.BlockSpec((TB, D), lambda i: (i, 0)),
                pl.BlockSpec((TB, D), lambda i: (i, 0)),
                pl.BlockSpec((TB, 1), lambda i: (i, 0)),
            ],
            out_specs=pl.BlockSpec((TB, 1), lambda i: (i, 0)),
        ),
        compiler_params=pltpu.CompilerParams(
            dimension_semantics=("parallel",),
            vmem_limit_bytes=int(vmem_limit),
        ),
        cost_estimate=pl.CostEstimate(
            flops=10 * B * D,
            transcendentals=3 * B,
            bytes_accessed=2 * B * D * itemsize + 2 * B * 4,
        ),
    )(x1, x2, lab2d)

    # Tiny final reduction (B floats) in XLA.
    return jnp.sum(per_sample) * (1.0 / B)


if __name__ == "__main__":
    key = jax.random.PRNGKey(0)
    k1, k2, k3 = jax.random.split(key, 3)

    B, D = 8, 32
    x1 = jax.random.normal(k1, (B, D), dtype=jnp.float32)
    x2 = jax.random.normal(k2, (B, D), dtype=jnp.float32)
    label = jax.random.bernoulli(k3, p=0.5, shape=(B,)).astype(jnp.float32)

    loss = contrastive_loss(x1, x2, label)
    jax.block_until_ready(loss)

    # Pure-JAX reference (same math as the PyTorch module).
    def ref(x1, x2, label):
        n1 = x1 / jnp.maximum(jnp.linalg.norm(x1, axis=1, keepdims=True), NORMALIZE_EPS)
        n2 = x2 / jnp.maximum(jnp.linalg.norm(x2, axis=1, keepdims=True), NORMALIZE_EPS)
        d = jnp.sqrt(jnp.sum((n1 - n2 + EPS) ** 2, axis=1))
        l = label * d ** 2 + (1 - label) * jnp.maximum(MARGIN - d, 0.0) ** 2
        return jnp.mean(l)

    assert jnp.allclose(loss, ref(x1, x2, label), atol=1e-5, rtol=1e-5)
    print("KERNEL_OK")
</pallas_src>

<mosaic_0001>
module attributes {stable_mosaic.version = 11 : i64} {
  func.func @_contrastive_loss_kernel(%arg0: i32, %arg1: memref<8x32xf32, #tpu.memory_space<vmem>>, %arg2: memref<8x32xf32, #tpu.memory_space<vmem>>, %arg3: memref<8x1xf32, #tpu.memory_space<vmem>>, %arg4: memref<8x1xf32, #tpu.memory_space<vmem>>) attributes {dimension_semantics = [#tpu.dimension_semantics<parallel>], iteration_bounds = array<i64: 1>, scalar_prefetch = 0 : i64, scratch_operands = 0 : i64, tpu.core_type = #tpu.core_type<tc>, window_params = [{transform_indices = @transform_0, window_bounds = array<i64: 8, 32>}, {transform_indices = @transform_1, window_bounds = array<i64: 8, 32>}, {transform_indices = @transform_2, window_bounds = array<i64: 8, 1>}, {transform_indices = @transform_3, window_bounds = array<i64: 8, 1>}]} {
    %c0 = arith.constant 0 : index
    %c0_0 = arith.constant 0 : index
    %0 = vector.load %arg1[%c0, %c0_0] : memref<8x32xf32, #tpu.memory_space<vmem>>, vector<8x32xf32>
    %c0_1 = arith.constant 0 : index
    %c0_2 = arith.constant 0 : index
    %1 = vector.load %arg2[%c0_1, %c0_2] : memref<8x32xf32, #tpu.memory_space<vmem>>, vector<8x32xf32>
    %c0_3 = arith.constant 0 : index
    %c0_4 = arith.constant 0 : index
    %2 = vector.load %arg3[%c0_3, %c0_4] : memref<8x1xf32, #tpu.memory_space<vmem>>, vector<8x1xf32>
    %3 = arith.mulf %0, %0 : vector<8x32xf32>
    %cst = arith.constant dense<0.000000e+00> : vector<8xf32>
    %4 = vector.multi_reduction <add>, %3, %cst [1] : vector<8x32xf32> to vector<8xf32>
    %5 = vector.shape_cast %4 : vector<8xf32> to vector<8x1xf32>
    %6 = arith.mulf %1, %1 : vector<8x32xf32>
    %cst_5 = arith.constant dense<0.000000e+00> : vector<8xf32>
    %7 = vector.multi_reduction <add>, %6, %cst_5 [1] : vector<8x32xf32> to vector<8xf32>
    %8 = vector.shape_cast %7 : vector<8xf32> to vector<8x1xf32>
    %cst_6 = arith.constant 1.000000e-24 : f32
    %9 = vector.broadcast %cst_6 : f32 to vector<8x1xf32>
    %10 = arith.maximumf %5, %9 : vector<8x1xf32>
    %11 = math.rsqrt %10 : vector<8x1xf32>
    %cst_7 = arith.constant 1.000000e-24 : f32
    %12 = vector.broadcast %cst_7 : f32 to vector<8x1xf32>
    %13 = arith.maximumf %8, %12 : vector<8x1xf32>
    %14 = math.rsqrt %13 : vector<8x1xf32>
    %15 = vector.broadcast %11 : vector<8x1xf32> to vector<8x32xf32>
    %16 = arith.mulf %0, %15 : vector<8x32xf32>
    %17 = vector.broadcast %14 : vector<8x1xf32> to vector<8x32xf32>
    %18 = arith.mulf %1, %17 : vector<8x32xf32>
    %19 = arith.subf %16, %18 : vector<8x32xf32>
    %cst_8 = arith.constant 9.99999997E-7 : f32
    %20 = vector.broadcast %cst_8 : f32 to vector<8x32xf32>
    %21 = arith.addf %19, %20 : vector<8x32xf32>
    %22 = arith.mulf %21, %21 : vector<8x32xf32>
    %cst_9 = arith.constant dense<0.000000e+00> : vector<8xf32>
    %23 = vector.multi_reduction <add>, %22, %cst_9 [1] : vector<8x32xf32> to vector<8xf32>
    %24 = vector.shape_cast %23 : vector<8xf32> to vector<8x1xf32>
    %25 = math.sqrt %24 : vector<8x1xf32>
    %cst_10 = arith.constant 1.000000e+00 : f32
    %26 = vector.broadcast %cst_10 : f32 to vector<8x1xf32>
    %27 = arith.subf %26, %25 : vector<8x1xf32>
    %cst_11 = arith.constant 0.000000e+00 : f32
    %28 = vector.broadcast %cst_11 : f32 to vector<8x1xf32>
    %29 = arith.maximumf %27, %28 : vector<8x1xf32>
    %30 = arith.mulf %2, %24 : vector<8x1xf32>
    %cst_12 = arith.constant 1.000000e+00 : f32
    %31 = vector.broadcast %cst_12 : f32 to vector<8x1xf32>
    %32 = arith.subf %31, %2 : vector<8x1xf32>
    %33 = arith.mulf %32, %29 : vector<8x1xf32>
    %34 = arith.mulf %33, %29 : vector<8x1xf32>
    %35 = arith.addf %30, %34 : vector<8x1xf32>
    %c0_13 = arith.constant 0 : index
    %c0_14 = arith.constant 0 : index
    %36 = vector.load %arg4[%c0_13, %c0_14] : memref<8x1xf32, #tpu.memory_space<vmem>>, vector<8x1xf32>
    tpu.vector_store %arg4[%c0_13, %c0_14], %35 {strides = array<i32>} : memref<8x1xf32, #tpu.memory_space<vmem>>, vector<8x1xf32>,
    return
  }
  func.func @transform_0(%arg0: i32) -> (i32, i32) {
    %c0_i32 = arith.constant 0 : i32
    %c0_i32_0 = arith.constant 0 : i32
    return %arg0, %c0_i32 : i32, i32
  }
  func.func @transform_1(%arg0: i32) -> (i32, i32) {
    %c0_i32 = arith.constant 0 : i32
    %c0_i32_0 = arith.constant 0 : i32
    return %arg0, %c0_i32 : i32, i32
  }
  func.func @transform_2(%arg0: i32) -> (i32, i32) {
    %c0_i32 = arith.constant 0 : i32
    %c0_i32_0 = arith.constant 0 : i32
    return %arg0, %c0_i32 : i32, i32
  }
  func.func @transform_3(%arg0: i32) -> (i32, i32) {
    %c0_i32 = arith.constant 0 : i32
    %c0_i32_0 = arith.constant 0 : i32
    return %arg0, %c0_i32 : i32, i32
  }
}

</mosaic_0001>

<llo_original>
// kernel: tpu_custom_call.1
$region0: #{tpu_custom_call.1}
  #allocation0 [shape = 'u32[]', space=smem, size = 0x4, offset = 0x4, fixed_abs, tag = 'smem constant byte address 0x4 - core index']
  #allocation1 [shape = 'u32[144,128]{1,0:T(1,128)}', space=vmem, size = 0x12000, scoped, tag = 'internal scratch']
  %s0 = inlined_call_operand.vmem [shape: f32[8,32], index: 0, kind: input, shape index: {}]
  %s1 = inlined_call_operand.hbm [shape: f32[8,32], index: 1, kind: input, shape index: {}]
  %s2 = inlined_call_operand.vmem [shape: f32[8,1], index: 2, kind: input, shape index: {}]
  %s3 = inlined_call_operand.vmem [shape: f32[8,1], index: 3, kind: output, shape index: {}]
  %s4 = sld [smem:[#allocation0]]
  $region26: #{tpu_custom_call.1} parent=0
    _
  %s6 = ssub.s32 1, %s4
  %s7 = scalar_select 0, %s6, %s4
  $region1: #{tpu_custom_call.1} parent=0
    #allocation2 [shape = 'u8[4096]{0}', space=vmem, size = 0x1000, scoped, tag = 'input window, operand 1, single buffered']
    #allocation3 [shape = 's32[1]{0}', space=sflag, size = 0x4, scoped, tag = 'scoped memory for tpu_custom_call.1']
    %8 = vsyncpa [#allocation3], 0
    // Predicated region
    $region2: #{tpu_custom_call.1} parent=1 // pred_check
      _
    $region3: #{tpu_custom_call.1} parent=1 // pred_check_branch
      %10 = sbr.rel (0) target = $region5
    $region4: #{tpu_custom_call.1} parent=1 // pred_region
      _
    $region5: #{tpu_custom_call.1} parent=1 // pred_fallthru
      _
    // Predicated region
    $region6: #{tpu_custom_call.1} parent=1 // pred_check
      _
    $region7: #{tpu_custom_call.1} parent=1 // pred_check_branch
      %12 = sbr.rel (0) target = $region9
    $region8: #{tpu_custom_call.1} parent=1 // pred_region
      %s14 = ssub.s32 128, 128
      %15 = vsyncadd [#allocation3], %s14
      %s17 = sshll.u32 [#allocation2], 4
      %s18 = int_to_ptr.vmem [resolvable:$true] %s17
      %20 = dma.hbm_to_vmem [thread:$0]  %s1, 128, %s18, [#allocation3]
    $region9: #{tpu_custom_call.1} parent=1 // pred_fallthru
      _
    // Predicated region
    $region10: #{tpu_custom_call.1} parent=1 // pred_check
      _
    $region11: #{tpu_custom_call.1} parent=1 // pred_check_branch
      %22 = sbr.rel (0) target = $region13
    $region12: #{tpu_custom_call.1} parent=1 // pred_region
      _
    $region13: #{tpu_custom_call.1} parent=1 // pred_fallthru
      _
    // Predicated region
    $region14: #{tpu_custom_call.1} parent=1 // pred_check
      _
    $region15: #{tpu_custom_call.1} parent=1 // pred_check_branch
      %24 = sbr.rel (0) target = $region17
    $region16: #{tpu_custom_call.1} parent=1 // pred_region
      %25 = dma.done [#allocation3], 128
    $region17: #{tpu_custom_call.1} parent=1 // pred_fallthru
      _
    %v26 = vld [vmem:[%s0] sm:$0xff]
    %v27 = vld [vmem:[#allocation2] sm:$0xff]
    %v28 = vld [vmem:[%s2] sm:$0xff]
    %v29 = vmul.f32 %v26, %v26
    %vm30 = vcmask 261120
    %v31 = vsel %vm30, %v29, 0.0
    %32 = vadd.xlane.f32.xlu0 %v31
    %v33 = vpop.xlane.xlu0 %32
    %v34 = vmul.f32 %v27, %v27
    %v35 = vsel %vm30, %v34, 0.0
    %36 = vadd.xlane.f32.xlu0 %v35
    %v37 = vpop.xlane.xlu0 %36
    %v38 = vmax.f32 %v33, 1e-24
    %v39 = vrsqrt.pop %v38
    %v40 = vmax.f32 %v37, 1e-24
    %v41 = vrsqrt.pop %v40
    %v42 = vmul.f32 %v26, %v39
    %v43 = vmul.f32 %v27, %v41
    %v44 = vsub.f32 %v42, %v43
    %v45 = vadd.f32 %v44, 1e-06
    %v46 = vmul.f32 %v45, %v45
    %v47 = vsel %vm30, %v46, 0.0
    %48 = vadd.xlane.f32.xlu0 %v47
    %v49 = vpop.xlane.xlu0 %48
    %v50 = vrsqrt.pop %v49
    %v51 = vmul.f32 %v49, %v50
    %vm52 = vcmp.eq.f32.partialorder %v49, inf
    %v53 = vsel %vm52, %v49, %v51
    %vm54 = vcmp.eq.f32.partialorder %v49, 0.0
    %v55 = vand.u32 %v49, 2147483648
    %v56 = vsel %vm54, %v55, %v53
    %v57 = vsub.f32 1.0, %v56
    %v58 = vmax.f32 %v57, 0.0
    %v59 = vmul.f32 %v28, %v49
    %v60 = vsub.f32 1.0, %v28
    %v61 = vmul.f32 %v60, %v58
    %v62 = vmul.f32 %v61, %v58
    %v63 = vadd.f32 %v59, %v62
    %vm64 = vcmask 7168
    %65 = vst.msk [vmem:[%s3] sm:$0xff] %vm64, %v63
    // Predicated region
    $region18: #{tpu_custom_call.1} parent=1 // pred_check
      _
    $region19: #{tpu_custom_call.1} parent=1 // pred_check_branch
      %67 = sbr.rel (0) target = $region21
    $region20: #{tpu_custom_call.1} parent=1 // pred_region
      _
    $region21: #{tpu_custom_call.1} parent=1 // pred_fallthru
      _
    // Predicated region
    $region22: #{tpu_custom_call.1} parent=1 // pred_check
      _
    $region23: #{tpu_custom_call.1} parent=1 // pred_check_branch
      %69 = sbr.rel (0) target = $region25
    $region24: #{tpu_custom_call.1} parent=1 // pred_region
      _
    $region25: #{tpu_custom_call.1} parent=1 // pred_fallthru
      _
    %70 = vsyncpa [#allocation3], 1

</llo_original>
